<compile_context>
chip_gen: v7x
topology: tpu7x:2x2x1
jax: 0.10.0
libtpu: 0.0.40
codegen_flags: <defaults>
</compile_context>

<pallas_src>
import jax
import jax.numpy as jnp
from jax.experimental import pallas as pl
from jax.experimental.pallas import tpu as pltpu


def _round_up(a, b):
    return -(-a // b) * b


def _style_kernel(x_ref, kv_ref, w12_ref, o_ref):
    # x_ref:   (C,   T)  input tile, channels in sublanes, spatial in lanes
    # kv_ref:  (Ckv, T)  k_v tile, same layout
    # w12_ref: (2C, Ckv) f32 folded weights:
    #            rows [0:C]  = gamma ⊙ W1          (LayerNorm scale folded in)
    #            rows [C:2C] = beta  ⊙ W1 + W2     (LayerNorm shift folded in)
    # o_ref:   (C,   T)
    C = x_ref.shape[0]
    Ckv = kv_ref.shape[0]

    x = x_ref[...].astype(jnp.float32)          # stats always in f32
    w12 = w12_ref[...]                          # (2C, Ckv) f32

    # ---- 1x1 conv over channels: kv12[c,t] = sum_k w12[c,k] * kv[k,t] ------
    if Ckv >= 32:
        # MXU path: single stacked matmul, then sublane split at row C.
        kv = kv_ref[...]
        if kv.dtype == jnp.bfloat16:
            w = w12.astype(jnp.bfloat16)        # native MXU dtype on v6e/v7x
        else:
            w = w12
            kv = kv.astype(jnp.float32)
        kv12 = jnp.dot(w, kv, preferred_element_type=jnp.float32)   # (2C, T)
        kv1 = kv12[:C]
        kv2 = kv12[C:]
    else:
        # Tiny contraction: unrolled VPU broadcast-FMA, skip the MXU entirely.
        kv = kv_ref[...].astype(jnp.float32)
        w1 = w12[:C]
        w2 = w12[C:]
        row0 = kv[0:1, :]                        # (1, T)
        kv1 = w1[:, 0:1] * row0                  # (C,1)*(1,T) -> (C, T)
        kv2 = w2[:, 0:1] * row0
        for k in range(1, Ckv):
            row = kv[k:k + 1, :]
            kv1 = kv1 + w1[:, k:k + 1] * row
            kv2 = kv2 + w2[:, k:k + 1] * row

    # ---- LayerNorm over channel (sublane) axis, two-pass variance ----------
    inv_c = 1.0 / C
    mu = jnp.sum(x, axis=0, keepdims=True) * inv_c            # (1, T)
    xc = x - mu
    var = jnp.sum(xc * xc, axis=0, keepdims=True) * inv_c     # (1, T)
    inv_std = jax.lax.rsqrt(var + 1e-5)                       # EUP rsqrt

    # gamma/beta already folded into kv1/kv2 via the weights.
    o_ref[...] = (xc * inv_std * kv1 + kv2).astype(o_ref.dtype)


def style_layer_pallas(x_nchw, kv_nchw, w_conv, gamma, beta, *, lane_tile=None):
    """x_nchw: (B, C, H, W); kv_nchw: (B, Ckv, H, W);
    w_conv: (2*C, Ckv, 1, 1) PyTorch conv weight; gamma, beta: (C,).
    Returns (B, C, H, W)."""
    B, C, H, W = x_nchw.shape
    Bk, Ckv, Hk, Wk = kv_nchw.shape
    assert (Bk, Hk, Wk) == (B, H, W), "k_v must match x spatially"
    HW = H * W

    # Native channels-first layout, spatial flattened into the lane dim.
    # Pure reshape — no transpose, no extra HBM traffic.
    x3 = x_nchw.reshape(B, C, HW)
    kv3 = kv_nchw.reshape(B, Ckv, HW)

    # Fold the LayerNorm affine into the (stacked) split 1x1-conv weights:
    #   out = (x-mu)*rsqrt(var+eps) * ((gamma⊙W1) kv) + ((beta⊙W1 + W2) kv)
    w_mat = w_conv.reshape(2 * C, Ckv).astype(jnp.float32)
    w1 = w_mat[:C]
    w2 = w_mat[C:]
    gcol = gamma.astype(jnp.float32).reshape(C, 1)
    bcol = beta.astype(jnp.float32).reshape(C, 1)
    w12p = jnp.concatenate([gcol * w1, bcol * w1 + w2], axis=0)   # (2C, Ckv)

    x_b = jnp.dtype(x_nchw.dtype).itemsize
    kv_b = jnp.dtype(kv_nchw.dtype).itemsize
    out_b = x_b

    # Generation-aware VMEM budgets: v5e/v6e have 128 MiB physical VMEM,
    # v7x only 64 MiB per TensorCore — don't reuse v6e-sized tiles there.
    try:
        vmem_cap = int(pltpu.get_tpu_info().vmem_capacity_bytes)
    except Exception:
        vmem_cap = 64 * 1024 * 1024              # conservative (v7x-sized)
    if vmem_cap >= 100 * 1024 * 1024:            # v5e / v6e
        tile_budget = 16 * 1024 * 1024
        vmem_limit = 64 * 1024 * 1024
    else:                                        # v7x
        tile_budget = 8 * 1024 * 1024
        vmem_limit = 32 * 1024 * 1024

    # Lane tile from real itemsizes (double-buffered IO) plus the in-kernel
    # f32 temporaries that Mosaic materializes at large T.
    if lane_tile is None:
        io_per_lane = 2 * (2 * C * x_b + Ckv * kv_b)   # x + out + kv, 2 buffers
        tmp_per_lane = (4 * C + Ckv) * 4               # f32 x, kv, kv1, kv2, out
        t = tile_budget // (io_per_lane + tmp_per_lane)
    else:
        t = lane_tile

    if HW <= 128:
        T = HW                                   # single full-extent lane block
    else:
        T = max(128, min((t // 128) * 128, _round_up(HW, 128)))
        # Keep both v7x TensorCores busy: at least 2 grid steps overall.
        if B * pl.cdiv(HW, T) < 2:
            T = max(128, _round_up(pl.cdiv(HW, 2), 128))

    n_lane = pl.cdiv(HW, T)                      # ragged last tile handled by Pallas
    grid = (B, n_lane)

    # Deeper buffering only when forced to small tiles (second-best to big T).
    use_deep = (T < 512) and (n_lane >= 4)

    def data_spec(nchan):
        idx = lambda bi, ti: (bi, 0, ti)
        if use_deep:
            return pl.BlockSpec((pl.Squeezed(), nchan, T), idx,
                                pipeline_mode=pl.Buffered(3))
        return pl.BlockSpec((pl.Squeezed(), nchan, T), idx)

    cost = pl.CostEstimate(
        flops=int(2 * B * HW * Ckv * (2 * C) + 8 * B * HW * C),
        transcendentals=int(B * HW),
        bytes_accessed=int(B * HW * (C * x_b + Ckv * kv_b + C * out_b)
                           + 2 * C * Ckv * 4),
    )

    out3 = pl.pallas_call(
        _style_kernel,
        out_shape=jax.ShapeDtypeStruct((B, C, HW), x_nchw.dtype),
        grid_spec=pltpu.PrefetchScalarGridSpec(
            num_scalar_prefetch=0,
            grid=grid,
            in_specs=[
                data_spec(C),                                        # x
                data_spec(Ckv),                                      # k_v
                pl.BlockSpec((2 * C, Ckv), lambda bi, ti: (0, 0)),   # weights, resident
            ],
            out_specs=pl.BlockSpec((pl.Squeezed(), C, T),
                                   lambda bi, ti: (bi, 0, ti)),
        ),
        compiler_params=pltpu.CompilerParams(
            dimension_semantics=("parallel", "parallel"),
            vmem_limit_bytes=vmem_limit,
        ),
        cost_estimate=cost,
    )(x3, kv3, w12p)

    return out3.reshape(B, C, H, W)


def style_layer_ref(x_nchw, kv_nchw, w_conv, gamma, beta):
    """Pure-JAX reference (mirrors the PyTorch module)."""
    B, C, H, W = x_nchw.shape
    Ckv = kv_nchw.shape[1]
    w_mat = w_conv.reshape(2 * C, Ckv)
    kv_proj = jnp.einsum("oc,bchw->bohw", w_mat, kv_nchw)
    kv1, kv2 = kv_proj[:, :C], kv_proj[:, C:]
    x3 = jnp.transpose(x_nchw, (0, 2, 3, 1))       # (B,H,W,C)
    mu = jnp.mean(x3, axis=-1, keepdims=True)
    var = jnp.mean((x3 - mu) ** 2, axis=-1, keepdims=True)
    xn = (x3 - mu) / jnp.sqrt(var + 1e-5) * gamma + beta
    xn = jnp.transpose(xn, (0, 3, 1, 2))
    return xn * kv1 + kv2


if __name__ == "__main__":
    key = jax.random.PRNGKey(0)

    def make_case(k, B, C, Ckv, H, W):
        k_x, k_kv, k_w, k_g, k_b = jax.random.split(k, 5)
        x = jax.random.normal(k_x, (B, C, H, W), dtype=jnp.float32)
        kv = jax.random.normal(k_kv, (B, Ckv, H, W), dtype=jnp.float32)
        w_conv = jax.random.normal(k_w, (2 * C, Ckv, 1, 1), dtype=jnp.float32) * 0.1
        gamma = 1.0 + 0.1 * jax.random.normal(k_g, (C,), dtype=jnp.float32)
        beta = 0.1 * jax.random.normal(k_b, (C,), dtype=jnp.float32)
        return x, kv, w_conv, gamma, beta

    keys = jax.random.split(key, 4)

    # 1) module-default small shape: B=2, ch=4, 16x16 — one 256-lane tile / batch.
    x, kv, w, g, b = make_case(keys[0], 2, 4, 4, 16, 16)
    out = jax.block_until_ready(style_layer_pallas(x, kv, w, g, b))
    ref = style_layer_ref(x, kv, w, g, b)
    assert out.shape == x.shape
    assert jnp.allclose(out, ref, atol=1e-4, rtol=1e-4), "mismatch (base)"

    # 2) forced-small tiles: grid (2, 8), exercises pl.Buffered(3) deep buffering.
    x, kv, w, g, b = make_case(keys[1], 2, 4, 4, 32, 32)
    out = jax.block_until_ready(style_layer_pallas(x, kv, w, g, b, lane_tile=128))
    ref = style_layer_ref(x, kv, w, g, b)
    assert jnp.allclose(out, ref, atol=1e-4, rtol=1e-4), "mismatch (small tiles)"

    # 3) ragged spatial (24*24 = 576 lanes): cdiv grid, Pallas masks the partial
    #    last lane tile — no jnp.pad / post-slice HBM round-trips.
    x, kv, w, g, b = make_case(keys[2], 2, 4, 4, 24, 24)
    out = jax.block_until_ready(style_layer_pallas(x, kv, w, g, b, lane_tile=256))
    ref = style_layer_ref(x, kv, w, g, b)
    assert jnp.allclose(out, ref, atol=1e-4, rtol=1e-4), "mismatch (ragged)"

    # 4) MXU path (Ckv >= 32): stacked single-dot projection; B=1 triggers the
    #    >=2-grid-steps split.  Looser tolerance: MXU f32 matmul uses bf16 passes.
    x, kv, w, g, b = make_case(keys[3], 1, 32, 32, 16, 16)
    out = jax.block_until_ready(style_layer_pallas(x, kv, w, g, b))
    ref = style_layer_ref(x, kv, w, g, b)
    assert jnp.allclose(out, ref, atol=3e-2, rtol=3e-2), "mismatch (MXU path)"

    print("KERNEL_OK")
</pallas_src>

<mosaic_0001>
module attributes {stable_mosaic.version = 11 : i64} {
  func.func @_style_kernel(%arg0: i32, %arg1: i32, %arg2: memref<1x4x256xf32, #tpu.memory_space<vmem>>, %arg3: memref<1x4x256xf32, #tpu.memory_space<vmem>>, %arg4: memref<8x4xf32, #tpu.memory_space<vmem>>, %arg5: memref<1x4x256xf32, #tpu.memory_space<vmem>>) attributes {dimension_semantics = [#tpu.dimension_semantics<parallel>, #tpu.dimension_semantics<parallel>], iteration_bounds = array<i64: 2, 1>, scalar_prefetch = 0 : i64, scratch_operands = 0 : i64, tpu.core_type = #tpu.core_type<tc>, window_params = [{transform_indices = @transform_0, window_bounds = array<i64: 1, 4, 256>}, {transform_indices = @transform_1, window_bounds = array<i64: 1, 4, 256>}, {pipeline_mode = #tpu.pipeline_mode<synchronous>, transform_indices = @transform_2, window_bounds = array<i64: 8, 4>}, {transform_indices = @transform_3, window_bounds = array<i64: 1, 4, 256>}]} {
    %c0 = arith.constant 0 : index
    %c0_0 = arith.constant 0 : index
    %c0_1 = arith.constant 0 : index
    %0 = vector.load %arg2[%c0, %c0_0, %c0_1] : memref<1x4x256xf32, #tpu.memory_space<vmem>>, vector<1x4x256xf32>
    %1 = vector.shape_cast %0 : vector<1x4x256xf32> to vector<4x256xf32>
    %c0_2 = arith.constant 0 : index
    %c0_3 = arith.constant 0 : index
    %2 = vector.load %arg4[%c0_2, %c0_3] : memref<8x4xf32, #tpu.memory_space<vmem>>, vector<8x4xf32>
    %c0_4 = arith.constant 0 : index
    %c0_5 = arith.constant 0 : index
    %c0_6 = arith.constant 0 : index
    %3 = vector.load %arg3[%c0_4, %c0_5, %c0_6] : memref<1x4x256xf32, #tpu.memory_space<vmem>>, vector<1x4x256xf32>
    %4 = vector.shape_cast %3 : vector<1x4x256xf32> to vector<4x256xf32>
    %5 = vector.extract_strided_slice %2 {offsets = [0, 0], sizes = [4, 4], strides = [1, 1]} : vector<8x4xf32> to vector<4x4xf32>
    %6 = vector.extract_strided_slice %2 {offsets = [4, 0], sizes = [4, 4], strides = [1, 1]} : vector<8x4xf32> to vector<4x4xf32>
    %7 = vector.extract_strided_slice %4 {offsets = [0, 0], sizes = [1, 256], strides = [1, 1]} : vector<4x256xf32> to vector<1x256xf32>
    %8 = vector.extract_strided_slice %5 {offsets = [0, 0], sizes = [4, 1], strides = [1, 1]} : vector<4x4xf32> to vector<4x1xf32>
    %9 = vector.broadcast %8 : vector<4x1xf32> to vector<4x256xf32>
    %10 = vector.broadcast %7 : vector<1x256xf32> to vector<4x256xf32>
    %11 = arith.mulf %9, %10 : vector<4x256xf32>
    %12 = vector.extract_strided_slice %6 {offsets = [0, 0], sizes = [4, 1], strides = [1, 1]} : vector<4x4xf32> to vector<4x1xf32>
    %13 = vector.broadcast %12 : vector<4x1xf32> to vector<4x256xf32>
    %14 = vector.broadcast %7 : vector<1x256xf32> to vector<4x256xf32>
    %15 = arith.mulf %13, %14 : vector<4x256xf32>
    %16 = vector.extract_strided_slice %4 {offsets = [1, 0], sizes = [1, 256], strides = [1, 1]} : vector<4x256xf32> to vector<1x256xf32>
    %17 = vector.extract_strided_slice %5 {offsets = [0, 1], sizes = [4, 1], strides = [1, 1]} : vector<4x4xf32> to vector<4x1xf32>
    %18 = vector.broadcast %17 : vector<4x1xf32> to vector<4x256xf32>
    %19 = vector.broadcast %16 : vector<1x256xf32> to vector<4x256xf32>
    %20 = arith.mulf %18, %19 : vector<4x256xf32>
    %21 = arith.addf %11, %20 : vector<4x256xf32>
    %22 = vector.extract_strided_slice %6 {offsets = [0, 1], sizes = [4, 1], strides = [1, 1]} : vector<4x4xf32> to vector<4x1xf32>
    %23 = vector.broadcast %22 : vector<4x1xf32> to vector<4x256xf32>
    %24 = vector.broadcast %16 : vector<1x256xf32> to vector<4x256xf32>
    %25 = arith.mulf %23, %24 : vector<4x256xf32>
    %26 = arith.addf %15, %25 : vector<4x256xf32>
    %27 = vector.extract_strided_slice %4 {offsets = [2, 0], sizes = [1, 256], strides = [1, 1]} : vector<4x256xf32> to vector<1x256xf32>
    %28 = vector.extract_strided_slice %5 {offsets = [0, 2], sizes = [4, 1], strides = [1, 1]} : vector<4x4xf32> to vector<4x1xf32>
    %29 = vector.broadcast %28 : vector<4x1xf32> to vector<4x256xf32>
    %30 = vector.broadcast %27 : vector<1x256xf32> to vector<4x256xf32>
    %31 = arith.mulf %29, %30 : vector<4x256xf32>
    %32 = arith.addf %21, %31 : vector<4x256xf32>
    %33 = vector.extract_strided_slice %6 {offsets = [0, 2], sizes = [4, 1], strides = [1, 1]} : vector<4x4xf32> to vector<4x1xf32>
    %34 = vector.broadcast %33 : vector<4x1xf32> to vector<4x256xf32>
    %35 = vector.broadcast %27 : vector<1x256xf32> to vector<4x256xf32>
    %36 = arith.mulf %34, %35 : vector<4x256xf32>
    %37 = arith.addf %26, %36 : vector<4x256xf32>
    %38 = vector.extract_strided_slice %4 {offsets = [3, 0], sizes = [1, 256], strides = [1, 1]} : vector<4x256xf32> to vector<1x256xf32>
    %39 = vector.extract_strided_slice %5 {offsets = [0, 3], sizes = [4, 1], strides = [1, 1]} : vector<4x4xf32> to vector<4x1xf32>
    %40 = vector.broadcast %39 : vector<4x1xf32> to vector<4x256xf32>
    %41 = vector.broadcast %38 : vector<1x256xf32> to vector<4x256xf32>
    %42 = arith.mulf %40, %41 : vector<4x256xf32>
    %43 = arith.addf %32, %42 : vector<4x256xf32>
    %44 = vector.extract_strided_slice %6 {offsets = [0, 3], sizes = [4, 1], strides = [1, 1]} : vector<4x4xf32> to vector<4x1xf32>
    %45 = vector.broadcast %44 : vector<4x1xf32> to vector<4x256xf32>
    %46 = vector.broadcast %38 : vector<1x256xf32> to vector<4x256xf32>
    %47 = arith.mulf %45, %46 : vector<4x256xf32>
    %48 = arith.addf %37, %47 : vector<4x256xf32>
    %cst = arith.constant dense<0.000000e+00> : vector<256xf32>
    %49 = vector.multi_reduction <add>, %1, %cst [0] : vector<4x256xf32> to vector<256xf32>
    %50 = vector.shape_cast %49 : vector<256xf32> to vector<1x256xf32>
    %cst_7 = arith.constant 2.500000e-01 : f32
    %51 = vector.broadcast %cst_7 : f32 to vector<1x256xf32>
    %52 = arith.mulf %50, %51 : vector<1x256xf32>
    %53 = vector.broadcast %52 : vector<1x256xf32> to vector<4x256xf32>
    %54 = arith.subf %1, %53 : vector<4x256xf32>
    %55 = arith.mulf %54, %54 : vector<4x256xf32>
    %cst_8 = arith.constant dense<0.000000e+00> : vector<256xf32>
    %56 = vector.multi_reduction <add>, %55, %cst_8 [0] : vector<4x256xf32> to vector<256xf32>
    %57 = vector.shape_cast %56 : vector<256xf32> to vector<1x256xf32>
    %cst_9 = arith.constant 2.500000e-01 : f32
    %58 = vector.broadcast %cst_9 : f32 to vector<1x256xf32>
    %59 = arith.mulf %57, %58 : vector<1x256xf32>
    %cst_10 = arith.constant 9.99999974E-6 : f32
    %60 = vector.broadcast %cst_10 : f32 to vector<1x256xf32>
    %61 = arith.addf %59, %60 : vector<1x256xf32>
    %62 = math.rsqrt %61 : vector<1x256xf32>
    %63 = vector.broadcast %62 : vector<1x256xf32> to vector<4x256xf32>
    %64 = arith.mulf %54, %63 : vector<4x256xf32>
    %65 = arith.mulf %64, %43 : vector<4x256xf32>
    %66 = arith.addf %65, %48 : vector<4x256xf32>
    %c0_11 = arith.constant 0 : index
    %c0_12 = arith.constant 0 : index
    %c0_13 = arith.constant 0 : index
    %67 = vector.load %arg5[%c0_11, %c0_12, %c0_13] : memref<1x4x256xf32, #tpu.memory_space<vmem>>, vector<1x4x256xf32>
    %68 = vector.shape_cast %67 : vector<1x4x256xf32> to vector<4x256xf32>
    %69 = vector.shape_cast %66 : vector<4x256xf32> to vector<1x4x256xf32>
    tpu.vector_store %arg5[%c0_11, %c0_12, %c0_13], %69 {strides = array<i32>} : memref<1x4x256xf32, #tpu.memory_space<vmem>>, vector<1x4x256xf32>,
    return
  }
  func.func @transform_0(%arg0: i32, %arg1: i32) -> (i32, i32, i32) {
    %c0_i32 = arith.constant 0 : i32
    %c0_i32_0 = arith.constant 0 : i32
    return %arg0, %c0_i32, %arg1 : i32, i32, i32
  }
  func.func @transform_1(%arg0: i32, %arg1: i32) -> (i32, i32, i32) {
    %c0_i32 = arith.constant 0 : i32
    %c0_i32_0 = arith.constant 0 : i32
    return %arg0, %c0_i32, %arg1 : i32, i32, i32
  }
  func.func @transform_2(%arg0: i32, %arg1: i32) -> (i32, i32) {
    %c0_i32 = arith.constant 0 : i32
    %c0_i32_0 = arith.constant 0 : i32
    %c0_i32_1 = arith.constant 0 : i32
    return %c0_i32, %c0_i32_0 : i32, i32
  }
  func.func @transform_3(%arg0: i32, %arg1: i32) -> (i32, i32, i32) {
    %c0_i32 = arith.constant 0 : i32
    %c0_i32_0 = arith.constant 0 : i32
    return %arg0, %c0_i32, %arg1 : i32, i32, i32
  }
}

</mosaic_0001>

<llo_original>
// kernel: tpu_custom_call.1
$region0: #{tpu_custom_call.1}
  #allocation0 [shape = 'u32[]', space=smem, size = 0x4, offset = 0x4, fixed_abs, tag = 'smem constant byte address 0x4 - core index']
  #allocation1 [shape = 'u32[144,128]{1,0:T(1,128)}', space=vmem, size = 0x12000, scoped, tag = 'internal scratch']
  %s0 = inlined_call_operand.hbm [shape: f32[2,4,256], index: 0, kind: input, shape index: {}]
  %s1 = inlined_call_operand.hbm [shape: f32[2,4,256], index: 1, kind: input, shape index: {}]
  %s2 = inlined_call_operand.vmem [shape: f32[8,4], index: 2, kind: input, shape index: {}]
  %s3 = inlined_call_operand.hbm [shape: f32[2,4,256], index: 3, kind: output, shape index: {}]
  %s4 = sld [smem:[#allocation0]]
  $region53: #{tpu_custom_call.1} parent=0
    _
  %s6 = ssub.s32 1, %s4
  %s7 = scalar_select 0, %s6, %s4
  $region1: #{tpu_custom_call.1} parent=0
    #allocation2 [shape = 'u8[8192]{0}', space=vmem, size = 0x2000, scoped, tag = 'input window, operand 0']
    #allocation3 [shape = 's32[2]{0}', space=sflag, size = 0x8, scoped, tag = 'scoped memory for tpu_custom_call.1']
    #allocation4 [shape = 's32[2]{0}', space=sflag, size = 0x8, scoped, tag = 'scoped memory for tpu_custom_call.1']
    #allocation5 [shape = 'u8[8192]{0}', space=vmem, size = 0x2000, scoped, tag = 'input window, operand 1']
    #allocation6 [shape = 's32[2]{0}', space=sflag, size = 0x8, scoped, tag = 'scoped memory for tpu_custom_call.1']
    #allocation7 [shape = 'u8[8192]{0}', space=vmem, size = 0x2000, scoped, tag = 'output window, operand 0']
    %8 = vsyncpa [#allocation3], 0
    %s9 = scalar_lea.sflag [#allocation3], 1
    %10 = vsyncpa %s9, 0
    %11 = vsyncpa [#allocation6], 0
    %s12 = scalar_lea.sflag [#allocation6], 1
    %13 = vsyncpa %s12, 0
    %14 = vsyncpa [#allocation4], 0
    %s15 = scalar_lea.sflag [#allocation4], 1
    %16 = vsyncpa %s15, 0
    loop: start=0, step=1, limit=4
    $region2: #{tpu_custom_call.1} parent=1 // loop_pre_header
      _
    $region3: #{tpu_custom_call.1} parent=1 // loop_header
      %s18 = sphi 0, %s22
      %p19 = scmp.ge.s32.totalorder %s18, 4
      %s25 = sphi 0, %s37
      %s26 = sphi 0, %s33
      %s27 = sphi 0, %s25
      %s28 = sphi 0, %s26
      %s29 = sphi 0, %s27
      %s30 = sphi 0, %s28
      %s42 = sphi 0, %s44
      %s45 = sphi 0, %s42
      %s46 = sphi 0, %s45
      %s62 = sphi 0, %s46
      %s70 = sphi 0, %s72
      %s73 = sphi 0, %s70
      %s74 = sphi 0, %s73
      %s90 = sphi 0, %s74
      %s94 = sphi 0, %s94
      %s96 = sphi 0, %s94
      %s97 = sphi 0, %s96
      %s111 = sphi 0, %s97
      %s119 = sphi 0, %s121
      %s122 = sphi 0, %s119
      %s123 = sphi 0, %s122
      %s139 = sphi 0, %s123
    $region4: #{tpu_custom_call.1} parent=1 // loop_header_branch
      %21 = sbr.rel (%p19) target = $region8
    $region5: #{tpu_custom_call.1} parent=1 // loop_body
      %s23 = ssub.s32 %s18, 1
      %s24 = ssub.s32 %s18, 2
      %s31 = sadd.s32 1, %s26
      %p32 = scmp.ge.s32.totalorder %s31, 1
      %s33 = scalar_select %p32, 0, %s31
      %s34 = sadd.s32 1, %s25
      %s35 = scalar_select %p32, %s34, %s25
      %p36 = scmp.ge.s32.totalorder %s35, 2
      %s37 = scalar_select %p36, 0, %s35
      %s38 = ssub.s32 %s25, %s37
      %s39 = ssub.s32 %s26, %s33
      %s40 = sor.u32 %s38, %s39
      %p41 = scmp.eq.s32.totalorder %s40, 0
      %s43 = sadd.s32 %s42, 1
      %s44 = scalar_select %p41, %s42, %s43
      %p47 = pneg %p41
      %p48 = scmp.eq.s32.totalorder %s18, 1
      %p49 = por %p47, %p48
      %p50 = scmp.ne.s32.totalorder %s42, %s45
      %p51 = scmp.eq.s32.totalorder %s18, 0
      %p52 = por %p50, %p51
      %p53 = scmp.ne.s32.totalorder %s42, %s45
      %p54 = scmp.eq.s32.totalorder %s23, 1
      %p55 = por %p53, %p54
      %p56 = scmp.ne.s32.totalorder %s45, %s46
      %p57 = scmp.eq.s32.totalorder %s23, 0
      %p58 = por %p56, %p57
      %p59 = scmp.ne.s32.totalorder %s45, %s46
      %p60 = scmp.eq.s32.totalorder %s24, 1
      %p61 = por %p59, %p60
      %p63 = scmp.ne.s32.totalorder %s46, %s62
      %p64 = scmp.eq.s32.totalorder %s24, 0
      %p65 = por %p63, %p64
      %s66 = ssub.s32 %s25, %s37
      %s67 = ssub.s32 %s26, %s33
      %s68 = sor.u32 %s66, %s67
      %p69 = scmp.eq.s32.totalorder %s68, 0
      %s71 = sadd.s32 %s70, 1
      %s72 = scalar_select %p69, %s70, %s71
      %p75 = pneg %p69
      %p76 = scmp.eq.s32.totalorder %s18, 1
      %p77 = por %p75, %p76
      %p78 = scmp.ne.s32.totalorder %s70, %s73
      %p79 = scmp.eq.s32.totalorder %s18, 0
      %p80 = por %p78, %p79
      %p81 = scmp.ne.s32.totalorder %s70, %s73
      %p82 = scmp.eq.s32.totalorder %s23, 1
      %p83 = por %p81, %p82
      %p84 = scmp.ne.s32.totalorder %s73, %s74
      %p85 = scmp.eq.s32.totalorder %s23, 0
      %p86 = por %p84, %p85
      %p87 = scmp.ne.s32.totalorder %s73, %s74
      %p88 = scmp.eq.s32.totalorder %s24, 1
      %p89 = por %p87, %p88
      %p91 = scmp.ne.s32.totalorder %s74, %s90
      %p92 = scmp.eq.s32.totalorder %s24, 0
      %p93 = por %p91, %p92
      %s95 = sadd.s32 %s94, 1
      %p98 = scmp.eq.s32.totalorder %s18, 1
      %p99 = scmp.ne.s32.totalorder %s94, %s96
      %p100 = scmp.eq.s32.totalorder %s18, 0
      %p101 = por %p99, %p100
      %p102 = scmp.ne.s32.totalorder %s94, %s96
      %p103 = scmp.eq.s32.totalorder %s23, 1
      %p104 = por %p102, %p103
      %p105 = scmp.ne.s32.totalorder %s96, %s97
      %p106 = scmp.eq.s32.totalorder %s23, 0
      %p107 = por %p105, %p106
      %p108 = scmp.ne.s32.totalorder %s96, %s97
      %p109 = scmp.eq.s32.totalorder %s24, 1
      %p110 = por %p108, %p109
      %p112 = scmp.ne.s32.totalorder %s97, %s111
      %p113 = scmp.eq.s32.totalorder %s24, 0
      %p114 = por %p112, %p113
      %s115 = ssub.s32 %s25, %s37
      %s116 = ssub.s32 %s26, %s33
      %s117 = sor.u32 %s115, %s116
      %p118 = scmp.eq.s32.totalorder %s117, 0
      %s120 = sadd.s32 %s119, 1
      %s121 = scalar_select %p118, %s119, %s120
      %p124 = pneg %p118
      %p125 = scmp.eq.s32.totalorder %s18, 1
      %p126 = por %p124, %p125
      %p127 = scmp.ne.s32.totalorder %s119, %s122
      %p128 = scmp.eq.s32.totalorder %s18, 0
      %p129 = por %p127, %p128
      %p130 = scmp.ne.s32.totalorder %s119, %s122
      %p131 = scmp.eq.s32.totalorder %s23, 1
      %p132 = por %p130, %p131
      %p133 = scmp.ne.s32.totalorder %s122, %s123
      %p134 = scmp.eq.s32.totalorder %s23, 0
      %p135 = por %p133, %p134
      %p136 = scmp.ne.s32.totalorder %s122, %s123
      %p137 = scmp.eq.s32.totalorder %s24, 1
      %p138 = por %p136, %p137
      %p140 = scmp.ne.s32.totalorder %s123, %s139
      %p141 = scmp.eq.s32.totalorder %s24, 0
      %p142 = por %p140, %p141
      %p143 = scmp.le.s32.totalorder 1, %s18
      %p144 = scmp.lt.s32.totalorder %s18, 3
      %p145 = pnand %p143, %p144
      %p146 = pneg %p145
      // Predicated region
      $region9: #{tpu_custom_call.1} parent=5 // pred_check
        _
      $region10: #{tpu_custom_call.1} parent=5 // pred_check_branch
        %148 = sbr.rel (%p145) target = $region12
      $region11: #{tpu_custom_call.1} parent=5 // pred_region
        %s149 = ssub.s32 %s18, 1
        // Predicated region
        $region13: #{tpu_custom_call.1} parent=11 // pred_check
          %p150 = pneg %p107
        $region14: #{tpu_custom_call.1} parent=11 // pred_check_branch
          %152 = sbr.rel (%p150) target = $region16
        $region15: #{tpu_custom_call.1} parent=11 // pred_region
          _
        $region16: #{tpu_custom_call.1} parent=11 // pred_fallthru
          _
      $region12: #{tpu_custom_call.1} parent=5 // pred_fallthru
        _
      %p153 = scmp.lt.s32.totalorder %s18, 2
      // Predicated region
      $region17: #{tpu_custom_call.1} parent=5 // pred_check
        %p154 = pneg %p153
      $region18: #{tpu_custom_call.1} parent=5 // pred_check_branch
        %156 = sbr.rel (%p154) target = $region20
      $region19: #{tpu_custom_call.1} parent=5 // pred_region
        // Predicated region
        $region21: #{tpu_custom_call.1} parent=19 // pred_check
          %p157 = pneg %p52
        $region22: #{tpu_custom_call.1} parent=19 // pred_check_branch
          %159 = sbr.rel (%p157) target = $region24
        $region23: #{tpu_custom_call.1} parent=19 // pred_region
          %s160 = sand.u32 %s42, 1
          %s161 = scalar_lea.sflag [#allocation3], %s160
          %s162 = sand.u32 %s42, 1
          %s163 = smul.addr %s162, 8
          %s164 = scalar_lea.vmem [#allocation2], %s163
          %s165 = smul.u32 2, %s26
          %s167 = ssub.s32 128, 128
          %168 = vsyncadd %s161, %s167
          %s169 = smul.addr %s25, 2
          %s170 = sadd.s32 %s165, %s169
          %s171 = smul.addr %s170, 64
          %s172 = scalar_lea.hbm %s0, %s171
          %s174 = sshll.u32 %s164, 4
          %s175 = int_to_ptr.vmem [resolvable:$true] %s174
          %177 = dma.hbm_to_vmem [thread:$0]  %s172, 128, %s175, %s161
        $region24: #{tpu_custom_call.1} parent=19 // pred_fallthru
          _
        // Predicated region
        $region25: #{tpu_custom_call.1} parent=19 // pred_check
          %p178 = pneg %p80
        $region26: #{tpu_custom_call.1} parent=19 // pred_check_branch
          %180 = sbr.rel (%p178) target = $region28
        $region27: #{tpu_custom_call.1} parent=19 // pred_region
          %s181 = sand.u32 %s70, 1
          %s182 = scalar_lea.sflag [#allocation6], %s181
          %s183 = sand.u32 %s70, 1
          %s184 = smul.addr %s183, 8
          %s185 = scalar_lea.vmem [#allocation5], %s184
          %s186 = smul.u32 2, %s26
          %s188 = ssub.s32 128, 128
          %189 = vsyncadd %s182, %s188
          %s190 = smul.addr %s25, 2
          %s191 = sadd.s32 %s186, %s190
          %s192 = smul.addr %s191, 64
          %s193 = scalar_lea.hbm %s1, %s192
          %s195 = sshll.u32 %s185, 4
          %s196 = int_to_ptr.vmem [resolvable:$true] %s195
          %198 = dma.hbm_to_vmem [thread:$0]  %s193, 128, %s196, %s182
        $region28: #{tpu_custom_call.1} parent=19 // pred_fallthru
          _
      $region20: #{tpu_custom_call.1} parent=5 // pred_fallthru
        _
      %p199 = scmp.le.s32.totalorder 1, %s18
      %p200 = scmp.lt.s32.totalorder %s18, 3
      %p201 = pnand %p199, %p200
      %p202 = pneg %p201
      // Predicated region
      $region29: #{tpu_custom_call.1} parent=5 // pred_check
        _
      $region30: #{tpu_custom_call.1} parent=5 // pred_check_branch
        %204 = sbr.rel (%p201) target = $region32
      $region31: #{tpu_custom_call.1} parent=5 // pred_region
        %s205 = ssub.s32 %s18, 1
        %s206 = sand.u32 %s45, 1
        %s207 = scalar_lea.sflag [#allocation3], %s206
        %s208 = sand.u32 %s45, 1
        %s209 = smul.addr %s208, 8
        %s210 = scalar_lea.vmem [#allocation2], %s209
        // Predicated region
        $region33: #{tpu_custom_call.1} parent=31 // pred_check
          %p211 = pneg %p58
        $region34: #{tpu_custom_call.1} parent=31 // pred_check_branch
          %213 = sbr.rel (%p211) target = $region36
        $region35: #{tpu_custom_call.1} parent=31 // pred_region
          %214 = dma.done %s207, 128
        $region36: #{tpu_custom_call.1} parent=31 // pred_fallthru
          _
        %s215 = sand.u32 %s73, 1
        %s216 = scalar_lea.sflag [#allocation6], %s215
        %s217 = sand.u32 %s73, 1
        %s218 = smul.addr %s217, 8
        %s219 = scalar_lea.vmem [#allocation5], %s218
        // Predicated region
        $region37: #{tpu_custom_call.1} parent=31 // pred_check
          %p220 = pneg %p86
        $region38: #{tpu_custom_call.1} parent=31 // pred_check_branch
          %222 = sbr.rel (%p220) target = $region40
        $region39: #{tpu_custom_call.1} parent=31 // pred_region
          %223 = dma.done %s216, 128
        $region40: #{tpu_custom_call.1} parent=31 // pred_fallthru
          _
        %s224 = sand.u32 %s45, 1
        %s225 = scalar_lea.sflag [#allocation3], %s224
        %s226 = sand.u32 %s45, 1
        %s227 = smul.addr %s226, 8
        %s228 = scalar_lea.vmem [#allocation2], %s227
        %p229 = pneg %p58
        %p230 = pneg %p55
        %s231 = sand.u32 %s73, 1
        %s232 = scalar_lea.sflag [#allocation6], %s231
        %s233 = sand.u32 %s73, 1
        %s234 = smul.addr %s233, 8
        %s235 = scalar_lea.vmem [#allocation5], %s234
        %p236 = pneg %p86
        %p237 = pneg %p83
        %p238 = pneg %p107
        %p239 = pneg %p104
        %p240 = pneg %p135
        %p241 = pneg %p132
        %s242 = sand.u32 %s122, 1
        %s243 = scalar_lea.sflag [#allocation4], %s242
        %s244 = sand.u32 %s122, 1
        %s245 = smul.addr %s244, 8
        %s246 = scalar_lea.vmem [#allocation7], %s245
        %s247 = smul.u32 2, %s28
        %s248 = smul.u32 2, %s28
        %s249 = smul.u32 2, %s28
        %v250 = vld [vmem:[%s210] sm:$0xff]
        %v251 = vld [vmem:[%s2] sm:$0xff]
        %v252 = vld [vmem:[%s219] sm:$0xff]
        %254 = vset.pattern.permute.xlu0 0
        %255 = vperm.xlu0 %254, %v251
        %v256 = vpop.permute.xlu0 %255
        %v259 = vlaneseq
        %v260 = vshrl.u32 %v259, 7
        %v261 = vsub.s32 0, %v260
        %v262 = vrot.slane %v252, %v261
        %v263 = vlaneseq
        %v264 = vshrl.u32 %v263, 7
        %v265 = vsub.s32 4, %v264
        %v266 = vrot.slane %v252, %v265
        %v269 = vlaneseq
        %v270 = vshrl.u32 %v269, 7
        %v271 = vsub.s32 0, %v270
        %v272 = vrot.slane %v262, %v271
        %v273 = vlaneseq
        %v274 = vshrl.u32 %v273, 7
        %v275 = vsub.s32 0, %v274
        %v276 = vrot.slane %v266, %v275
        %v277 = vmul.f32 %v256, %v272
        %v278 = vmul.f32 %v256, %v276
        %279 = vset.pattern.permute.xlu0 1
        %280 = vperm.xlu0 %279, %v251
        %v281 = vpop.permute.xlu0 %280
        %v283 = vlaneseq
        %v284 = vshrl.u32 %v283, 7
        %v285 = vsub.s32 1, %v284
        %v286 = vrot.slane %v252, %v285
        %v287 = vlaneseq
        %v288 = vshrl.u32 %v287, 7
        %v289 = vsub.s32 5, %v288
        %v290 = vrot.slane %v252, %v289
        %v293 = vlaneseq
        %v294 = vshrl.u32 %v293, 7
        %v295 = vsub.s32 1, %v294
        %v296 = vrot.slane %v286, %v295
        %v297 = vlaneseq
        %v298 = vshrl.u32 %v297, 7
        %v299 = vsub.s32 1, %v298
        %v300 = vrot.slane %v290, %v299
        %v301 = vmul.f32 %v281, %v296
        %v302 = vmul.f32 %v281, %v300
        %v303 = vadd.f32 %v277, %v301
        %v304 = vadd.f32 %v278, %v302
        %305 = vset.pattern.permute.xlu0 2
        %306 = vperm.xlu0 %305, %v251
        %v307 = vpop.permute.xlu0 %306
        %v309 = vlaneseq
        %v310 = vshrl.u32 %v309, 7
        %v311 = vsub.s32 2, %v310
        %v312 = vrot.slane %v252, %v311
        %v313 = vlaneseq
        %v314 = vshrl.u32 %v313, 7
        %v315 = vsub.s32 6, %v314
        %v316 = vrot.slane %v252, %v315
        %v319 = vlaneseq
        %v320 = vshrl.u32 %v319, 7
        %v321 = vsub.s32 2, %v320
        %v322 = vrot.slane %v312, %v321
        %v323 = vlaneseq
        %v324 = vshrl.u32 %v323, 7
        %v325 = vsub.s32 2, %v324
        %v326 = vrot.slane %v316, %v325
        %v327 = vmul.f32 %v307, %v322
        %v328 = vmul.f32 %v307, %v326
        %v329 = vadd.f32 %v303, %v327
        %v330 = vadd.f32 %v304, %v328
        %331 = vset.pattern.permute.xlu0 3
        %332 = vperm.xlu0 %331, %v251
        %v333 = vpop.permute.xlu0 %332
        %v335 = vlaneseq
        %v336 = vshrl.u32 %v335, 7
        %v337 = vsub.s32 3, %v336
        %v338 = vrot.slane %v252, %v337
        %v339 = vlaneseq
        %v340 = vshrl.u32 %v339, 7
        %v341 = vsub.s32 7, %v340
        %v342 = vrot.slane %v252, %v341
        %v345 = vlaneseq
        %v346 = vshrl.u32 %v345, 7
        %v347 = vsub.s32 3, %v346
        %v348 = vrot.slane %v338, %v347
        %v349 = vlaneseq
        %v350 = vshrl.u32 %v349, 7
        %v351 = vsub.s32 3, %v350
        %v352 = vrot.slane %v342, %v351
        %v353 = vmul.f32 %v333, %v348
        %v354 = vmul.f32 %v333, %v352
        %v355 = vadd.f32 %v329, %v353
        %v356 = vadd.f32 %v330, %v354
        %v358 = vcombine.high %v250, %v250
        %vm360 = vcmask 1043456
        %v361 = vsel %vm360, %v250, 0.0
        %v362 = vrot.slane %v361, 4
        %v363 = vadd.f32 %v361, %v362
        %v364 = vrot.slane %v363, 2
        %v365 = vadd.f32 %v363, %v364
        %v366 = vrot.slane %v365, 1
        %v367 = vadd.f32 %v365, %v366
        %v368 = vsel %vm360, %v358, 0.0
        %v369 = vrot.slane %v368, 4
        %v370 = vadd.f32 %v368, %v369
        %v371 = vrot.slane %v370, 2
        %v372 = vadd.f32 %v370, %v371
        %v373 = vrot.slane %v372, 1
        %v374 = vadd.f32 %v372, %v373
        %v375 = vmul.f32 %v367, 0.25
        %v376 = vmul.f32 %v374, 0.25
        %v379 = vcombine.low %v375, %v376
        %v381 = vsub.f32 %v250, %v379
        %v382 = vmul.f32 %v381, %v381
        %v384 = vcombine.high %v382, %v382
        %v386 = vsel %vm360, %v382, 0.0
        %v387 = vrot.slane %v386, 4
        %v388 = vadd.f32 %v386, %v387
        %v389 = vrot.slane %v388, 2
        %v390 = vadd.f32 %v388, %v389
        %v391 = vrot.slane %v390, 1
        %v392 = vadd.f32 %v390, %v391
        %v393 = vsel %vm360, %v384, 0.0
        %v394 = vrot.slane %v393, 4
        %v395 = vadd.f32 %v393, %v394
        %v396 = vrot.slane %v395, 2
        %v397 = vadd.f32 %v395, %v396
        %v398 = vrot.slane %v397, 1
        %v399 = vadd.f32 %v397, %v398
        %v400 = vmul.f32 %v392, 0.25
        %v401 = vmul.f32 %v399, 0.25
        %v402 = vadd.f32 %v400, 1e-05
        %v403 = vadd.f32 %v401, 1e-05
        %v404 = vrsqrt.pop %v402
        %v405 = vrsqrt.pop %v403
        %v408 = vcombine.low %v404, %v405
        %v410 = vmul.f32 %v381, %v408
        %v413 = vcombine.low %v355, %v356
        %v415 = vmul.f32 %v410, %v413
        %v416 = vcombine.high %v355, %v356
        %v418 = vadd.f32 %v415, %v416
        %419 = vst [vmem:[%s246] sm:$0xff] %v418
        %s420 = sand.u32 %s122, 1
        %s421 = scalar_lea.sflag [#allocation4], %s420
        %s422 = sand.u32 %s122, 1
        %s423 = smul.addr %s422, 8
        %s424 = scalar_lea.vmem [#allocation7], %s423
        // Predicated region
        $region41: #{tpu_custom_call.1} parent=31 // pred_check
          %p425 = pneg %p132
        $region42: #{tpu_custom_call.1} parent=31 // pred_check_branch
          %427 = sbr.rel (%p425) target = $region44
        $region43: #{tpu_custom_call.1} parent=31 // pred_region
          %s428 = smul.u32 2, %s28
          %s430 = ssub.s32 128, 128
          %431 = vsyncadd %s421, %s430
          %s432 = smul.addr %s27, 2
          %s433 = sadd.s32 %s428, %s432
          %s434 = smul.addr %s433, 64
          %s435 = scalar_lea.hbm %s3, %s434
          %s437 = sshll.u32 %s424, 4
          %s438 = int_to_ptr.vmem [resolvable:$true] %s437
          %440 = dma.vmem_to_hbm [thread:$0]  %s438, 128, %s435, %s421
        $region44: #{tpu_custom_call.1} parent=31 // pred_fallthru
          _
      $region32: #{tpu_custom_call.1} parent=5 // pred_fallthru
        _
      %p441 = scmp.le.s32.totalorder 2, %s18
      // Predicated region
      $region45: #{tpu_custom_call.1} parent=5 // pred_check
        %p442 = pneg %p441
      $region46: #{tpu_custom_call.1} parent=5 // pred_check_branch
        %444 = sbr.rel (%p442) target = $region48
      $region47: #{tpu_custom_call.1} parent=5 // pred_region
        %s445 = ssub.s32 %s18, 2
        // Predicated region
        $region49: #{tpu_custom_call.1} parent=47 // pred_check
          %p446 = pneg %p138
        $region50: #{tpu_custom_call.1} parent=47 // pred_check_branch
          %448 = sbr.rel (%p446) target = $region52
        $region51: #{tpu_custom_call.1} parent=47 // pred_region
          %s449 = sand.u32 %s123, 1
          %s450 = scalar_lea.sflag [#allocation4], %s449
          %s451 = sand.u32 %s123, 1
          %s452 = smul.addr %s451, 8
          %s453 = scalar_lea.vmem [#allocation7], %s452
          %454 = dma.done %s450, 128
        $region52: #{tpu_custom_call.1} parent=47 // pred_fallthru
          _
      $region48: #{tpu_custom_call.1} parent=5 // pred_fallthru
        _
    $region6: #{tpu_custom_call.1} parent=1 // loop_footer
      %s22 = sadd.s32 1, %s18
    $region7: #{tpu_custom_call.1} parent=1 // loop_footer_branch
      %17 = sbr.rel target = $region3
    $region8: #{tpu_custom_call.1} parent=1 // loop_exit
      _
    %455 = vsyncpa [#allocation3], 1
    %s456 = scalar_lea.sflag [#allocation3], 1
    %457 = vsyncpa %s456, 1
    %458 = vsyncpa [#allocation6], 1
    %s459 = scalar_lea.sflag [#allocation6], 1
    %460 = vsyncpa %s459, 1
    %461 = vsyncpa [#allocation4], 1
    %s462 = scalar_lea.sflag [#allocation4], 1
    %463 = vsyncpa %s462, 1

</llo_original>
